<compile_context>
chip_gen: v5e
topology: v5e:2x2
jax: 0.10.0
libtpu: 0.0.40
codegen_flags: <defaults>
</compile_context>

<pallas_src>
import jax
import jax.numpy as jnp
from jax.experimental import pallas as pl
from jax.experimental.pallas import tpu as pltpu

_LANE = 128
_SUBLANE = 8
_VREG_ELEMS = _LANE * _SUBLANE  # 1024
# 2 inputs + 1 output, f32, single (un-pipelined) block => 12 bytes/elem.
# Cap the padded element count so the block stays <~6 MiB (safe on v5e's
# 16 MiB default scoped VMEM and everything newer).
_MAX_PADDED_ELEMS = 512 * 1024


def _defuzzy_kernel(tw_ref, bc_ref, out_ref):
    tw = tw_ref[0]               # scalar total_weight from SMEM
    b = bc_ref[0]                # (rows, 128) f32
    c = bc_ref[1]                # (rows, 128) f32

    # Whole-vector reductions (scalar results, XLU cross-lane reduce).
    min_b = jnp.min(b)
    max_b = jnp.max(b)
    min_c = jnp.min(c)
    max_c = jnp.max(c)

    rb = max_b - min_b
    rc = max_c - min_c

    # One scalar reciprocal per input; range == 0 -> scale 0 (matches the
    # PyTorch "term is 0" behavior). Safe divide avoids generating inf.
    scale_b = jnp.where(rb != 0.0, 1.0 / jnp.where(rb != 0.0, rb, 1.0), 0.0)
    scale_c = jnp.where(rc != 0.0, 1.0 / jnp.where(rc != 0.0, rc, 1.0), 0.0)

    # Fold the weights and the -min offsets into scalar coefficients so the
    # elementwise pass is just 2 mul + 2 add per element (FMA-friendly).
    wb = (tw + 0.3) * scale_b
    wc = (1.55 - tw) * scale_c          # 1 - tw + 0.55
    bias = -(wb * min_b + wc * min_c)

    out_ref[...] = wb * b + wc * c + bias


def _pad_lane_dense(x, pad_n):
    """Pad a 1-D vector to pad_n elements using its first element (min/max
    invariant) and reshape to a lane-dense (rows, 128) slab."""
    n = x.shape[0]
    if pad_n > n:
        x = jnp.concatenate([x, jnp.full((pad_n - n,), x[0], x.dtype)])
    return x.reshape(pad_n // _LANE, _LANE)


def defuzzy_layer(B, C, total_weight):
    """B, C: 1-D float arrays of equal length N; total_weight: scalar."""
    B = jnp.asarray(B, jnp.float32)
    C = jnp.asarray(C, jnp.float32)
    n = B.shape[0]
    assert C.shape[0] == n and n >= 1

    # Pad N up to a multiple of 1024 (full vregs: rows multiple of 8, lanes 128).
    pad_n = max(_VREG_ELEMS, pl.cdiv(n, _VREG_ELEMS) * _VREG_ELEMS)
    if pad_n > _MAX_PADDED_ELEMS:
        # TODO(synk): tiled two-phase reduction + elementwise pipeline for huge N.
        raise NotImplementedError(
            f"N={n} exceeds the single-VMEM-block path ({_MAX_PADDED_ELEMS})."
        )
    rows = pad_n // _LANE

    b2 = _pad_lane_dense(B, pad_n)
    c2 = _pad_lane_dense(C, pad_n)
    bc = jnp.stack([b2, c2], axis=0)                    # (2, rows, 128)
    tw = jnp.asarray(total_weight, jnp.float32).reshape(1)

    out = pl.pallas_call(
        _defuzzy_kernel,
        out_shape=jax.ShapeDtypeStruct((rows, _LANE), jnp.float32),
        in_specs=[
            pl.BlockSpec(memory_space=pltpu.SMEM),      # total_weight scalar
            pl.BlockSpec(memory_space=pltpu.VMEM),      # packed B/C slab
        ],
        out_specs=pl.BlockSpec(memory_space=pltpu.VMEM),
    )(tw, bc)

    return out.reshape(pad_n)[:n]


def _reference(B, C, total_weight):
    """Plain-JAX reference mirroring the PyTorch forward exactly."""
    B = jnp.asarray(B, jnp.float32)
    C = jnp.asarray(C, jnp.float32)
    max_c, min_c = jnp.max(C), jnp.min(C)
    max_b, min_b = jnp.max(B), jnp.min(B)
    rc = max_c - min_c
    rb = max_b - min_b
    ci = jnp.where(rc != 0, (C - min_c) / jnp.where(rc != 0, rc, 1.0), 0.0)
    bi = jnp.where(rb != 0, (B - min_b) / jnp.where(rb != 0, rb, 1.0), 0.0)
    tw = jnp.float32(total_weight)
    return (tw + 0.3) * bi + (1.0 - tw + 0.55) * ci


if __name__ == "__main__":
    key = jax.random.PRNGKey(0)
    kb, kc, kb2, kc2 = jax.random.split(key, 4)

    total_weight = jnp.float32(0.6)

    # Case 1: the module's actual tiny use case (N = 8 servers/scores).
    N1 = 8
    B1 = jax.random.uniform(kb, (N1,), dtype=jnp.float32)
    C1 = jax.random.uniform(kc, (N1,), dtype=jnp.float32)
    s1 = defuzzy_layer(B1, C1, total_weight)
    jax.block_until_ready(s1)
    r1 = _reference(B1, C1, total_weight)
    assert s1.shape == (N1,)
    assert jnp.allclose(s1, r1, atol=1e-5, rtol=1e-5)

    # Case 2: a non-multiple-of-1024 length to exercise the padding path.
    N2 = 300
    B2 = jax.random.uniform(kb2, (N2,), dtype=jnp.float32) * 5.0
    C2 = jax.random.uniform(kc2, (N2,), dtype=jnp.float32) * 3.0 + 1.0
    s2 = defuzzy_layer(B2, C2, total_weight)
    jax.block_until_ready(s2)
    r2 = _reference(B2, C2, total_weight)
    assert s2.shape == (N2,)
    assert jnp.allclose(s2, r2, atol=1e-5, rtol=1e-5)

    # Case 3: degenerate range (all-equal C) -> ci term must be exactly 0.
    B3 = jnp.arange(8, dtype=jnp.float32)
    C3 = jnp.full((8,), 2.5, dtype=jnp.float32)
    s3 = defuzzy_layer(B3, C3, total_weight)
    jax.block_until_ready(s3)
    r3 = _reference(B3, C3, total_weight)
    assert jnp.allclose(s3, r3, atol=1e-5, rtol=1e-5)

    print("KERNEL_OK")
</pallas_src>

<mosaic_0001>
module attributes {stable_mosaic.version = 11 : i64} {
  func.func @_defuzzy_kernel(%arg0: memref<1xf32, #tpu.memory_space<smem>>, %arg1: memref<2x8x128xf32, #tpu.memory_space<vmem>>, %arg2: memref<8x128xf32, #tpu.memory_space<vmem>>) attributes {dimension_semantics = [], scalar_prefetch = 0 : i64, scratch_operands = 0 : i64, tpu.core_type = #tpu.core_type<tc>} {
    %c0 = arith.constant 0 : index
    %0 = memref.load %arg0[%c0] : memref<1xf32, #tpu.memory_space<smem>>
    %c0_0 = arith.constant 0 : index
    %c0_1 = arith.constant 0 : index
    %c0_2 = arith.constant 0 : index
    %1 = vector.load %arg1[%c0_0, %c0_1, %c0_2] : memref<2x8x128xf32, #tpu.memory_space<vmem>>, vector<1x8x128xf32>
    %2 = vector.shape_cast %1 : vector<1x8x128xf32> to vector<8x128xf32>
    %c1 = arith.constant 1 : index
    %c0_3 = arith.constant 0 : index
    %c0_4 = arith.constant 0 : index
    %3 = vector.load %arg1[%c1, %c0_3, %c0_4] : memref<2x8x128xf32, #tpu.memory_space<vmem>>, vector<1x8x128xf32>
    %4 = vector.shape_cast %3 : vector<1x8x128xf32> to vector<8x128xf32>
    %5 = vector.shape_cast %2 : vector<8x128xf32> to vector<1x8x128xf32>
    %cst = arith.constant dense<0x7F800000> : vector<1xf32>
    %6 = vector.multi_reduction <minimumf>, %5, %cst [1, 2] : vector<1x8x128xf32> to vector<1xf32>
    %7 = vector.shape_cast %6 : vector<1xf32> to vector<1x1x1xf32>
    %8 = vector.extract %7[0, 0, 0] : f32 from vector<1x1x1xf32>
    %9 = vector.shape_cast %2 : vector<8x128xf32> to vector<1x8x128xf32>
    %cst_5 = arith.constant dense<0xFF800000> : vector<1xf32>
    %10 = vector.multi_reduction <maximumf>, %9, %cst_5 [1, 2] : vector<1x8x128xf32> to vector<1xf32>
    %11 = vector.shape_cast %10 : vector<1xf32> to vector<1x1x1xf32>
    %12 = vector.extract %11[0, 0, 0] : f32 from vector<1x1x1xf32>
    %13 = vector.shape_cast %4 : vector<8x128xf32> to vector<1x8x128xf32>
    %cst_6 = arith.constant dense<0x7F800000> : vector<1xf32>
    %14 = vector.multi_reduction <minimumf>, %13, %cst_6 [1, 2] : vector<1x8x128xf32> to vector<1xf32>
    %15 = vector.shape_cast %14 : vector<1xf32> to vector<1x1x1xf32>
    %16 = vector.extract %15[0, 0, 0] : f32 from vector<1x1x1xf32>
    %17 = vector.shape_cast %4 : vector<8x128xf32> to vector<1x8x128xf32>
    %cst_7 = arith.constant dense<0xFF800000> : vector<1xf32>
    %18 = vector.multi_reduction <maximumf>, %17, %cst_7 [1, 2] : vector<1x8x128xf32> to vector<1xf32>
    %19 = vector.shape_cast %18 : vector<1xf32> to vector<1x1x1xf32>
    %20 = vector.extract %19[0, 0, 0] : f32 from vector<1x1x1xf32>
    %21 = arith.subf %12, %8 : f32
    %22 = arith.subf %20, %16 : f32
    %cst_8 = arith.constant 0.000000e+00 : f32
    %23 = arith.cmpf one, %21, %cst_8 : f32
    %cst_9 = arith.constant 0.000000e+00 : f32
    %24 = arith.cmpf one, %21, %cst_9 : f32
    %cst_10 = arith.constant 1.000000e+00 : f32
    %25 = arith.select %24, %21, %cst_10 : f32
    %cst_11 = arith.constant 1.000000e+00 : f32
    %26 = arith.divf %cst_11, %25 : f32
    %cst_12 = arith.constant 0.000000e+00 : f32
    %27 = arith.select %23, %26, %cst_12 : f32
    %cst_13 = arith.constant 0.000000e+00 : f32
    %28 = arith.cmpf one, %22, %cst_13 : f32
    %cst_14 = arith.constant 0.000000e+00 : f32
    %29 = arith.cmpf one, %22, %cst_14 : f32
    %cst_15 = arith.constant 1.000000e+00 : f32
    %30 = arith.select %29, %22, %cst_15 : f32
    %cst_16 = arith.constant 1.000000e+00 : f32
    %31 = arith.divf %cst_16, %30 : f32
    %cst_17 = arith.constant 0.000000e+00 : f32
    %32 = arith.select %28, %31, %cst_17 : f32
    %cst_18 = arith.constant 3.000000e-01 : f32
    %33 = arith.addf %0, %cst_18 : f32
    %34 = arith.mulf %33, %27 : f32
    %cst_19 = arith.constant 1.550000e+00 : f32
    %35 = arith.subf %cst_19, %0 : f32
    %36 = arith.mulf %35, %32 : f32
    %37 = arith.mulf %34, %8 : f32
    %38 = arith.mulf %36, %16 : f32
    %39 = arith.addf %37, %38 : f32
    %cst_20 = arith.constant 0.000000e+00 : f32
    %40 = arith.subf %cst_20, %39 : f32
    %41 = vector.broadcast %34 : f32 to vector<8x128xf32>
    %42 = arith.mulf %41, %2 : vector<8x128xf32>
    %43 = vector.broadcast %36 : f32 to vector<8x128xf32>
    %44 = arith.mulf %43, %4 : vector<8x128xf32>
    %45 = arith.addf %42, %44 : vector<8x128xf32>
    %46 = vector.broadcast %40 : f32 to vector<8x128xf32>
    %47 = arith.addf %45, %46 : vector<8x128xf32>
    %c0_21 = arith.constant 0 : index
    %c0_22 = arith.constant 0 : index
    %48 = vector.load %arg2[%c0_21, %c0_22] : memref<8x128xf32, #tpu.memory_space<vmem>>, vector<8x128xf32>
    tpu.vector_store %arg2[%c0_21, %c0_22], %47 {strides = array<i32>} : memref<8x128xf32, #tpu.memory_space<vmem>>, vector<8x128xf32>,
    return
  }
}

</mosaic_0001>

<llo_original>
// kernel: tpu_custom_call.1
$region0: #{tpu_custom_call.1}
  #allocation0 [shape = 'u32[]', space=smem, size = 0x4, offset = 0x4, fixed_abs, tag = 'smem constant byte address 0x4 - core index']
  #allocation1 [shape = 'u32[72,128]{1,0:T(1,128)}', space=vmem, size = 0x9000, scoped, tag = 'internal scratch']
  #allocation2 [shape = 'f32[1]{0:T(128)S(6)}', space=smem, size = 0x200, scoped, tag = 'scoped memory for tpu_custom_call.1']
  %s0 = inlined_call_operand.<no memory space> [shape: f32[1], index: 0, kind: input, shape index: {}]
  %s1 = inlined_call_operand.hbm [shape: f32[2,8,128], index: 1, kind: input, shape index: {}]
  %s2 = inlined_call_operand.hbm [shape: f32[8,128], index: 2, kind: output, shape index: {}]
  %s3 = sld [smem:[#allocation0]]
  $region22: #{tpu_custom_call.1} parent=0
    _
  %s5 = ssub.s32 1, %s3
  %s6 = scalar_select 0, %s5, %s3
  %7 = sst [smem:[#allocation2]] %s0
  $region1: #{tpu_custom_call.1} parent=0
    #allocation3 [shape = 'u8[8192]{0}', space=vmem, size = 0x2000, scoped, tag = 'input window, operand 1, single buffered']
    #allocation4 [shape = 's32[1]{0}', space=sflag, size = 0x4, scoped, tag = 'scoped memory for tpu_custom_call.1']
    #allocation5 [shape = 's32[1]{0}', space=sflag, size = 0x4, scoped, tag = 'scoped memory for tpu_custom_call.1']
    #allocation6 [shape = 'u8[4096]{0}', space=vmem, size = 0x1000, scoped, tag = 'output window, operand 0, single buffered']
    %8 = vsyncpa [#allocation4], 0
    %9 = vsyncpa [#allocation5], 0
    // Predicated region
    $region2: #{tpu_custom_call.1} parent=1 // pred_check
      _
    $region3: #{tpu_custom_call.1} parent=1 // pred_check_branch
      %11 = sbr.rel (0) target = $region5
    $region4: #{tpu_custom_call.1} parent=1 // pred_region
      _
    $region5: #{tpu_custom_call.1} parent=1 // pred_fallthru
      _
    // Predicated region
    $region6: #{tpu_custom_call.1} parent=1 // pred_check
      _
    $region7: #{tpu_custom_call.1} parent=1 // pred_check_branch
      %13 = sbr.rel (0) target = $region9
    $region8: #{tpu_custom_call.1} parent=1 // pred_region
      %15 = vsyncadd [#allocation4], 0
      %s16 = sshll.u32 %s1, 4
      %s17 = int_to_ptr.hbm [resolvable:$true] %s16
      %s18 = sshll.u32 [#allocation3], 4
      %s19 = int_to_ptr.vmem [resolvable:$true] %s18
      %24 = dma.hbm_to_vmem [thread:$0]  %s17, 256, %s19, [#allocation4], 128, 128, 8
    $region9: #{tpu_custom_call.1} parent=1 // pred_fallthru
      _
    // Predicated region
    $region10: #{tpu_custom_call.1} parent=1 // pred_check
      _
    $region11: #{tpu_custom_call.1} parent=1 // pred_check_branch
      %26 = sbr.rel (0) target = $region13
    $region12: #{tpu_custom_call.1} parent=1 // pred_region
      %28 = dma.done [#allocation4], 256
    $region13: #{tpu_custom_call.1} parent=1 // pred_fallthru
      _
    %s29 = sld [smem:[#allocation2]]
    %v30 = vld [vmem:[#allocation3] sm:$0xff]
    %s31 = scalar_lea.vmem [#allocation3], 8
    %v32 = vld [vmem:[%s31] sm:$0xff]
    %33 = vmin.xlane.f32.xlu0 %v30
    %v34 = vpop.xlane.xlu0 %33
    %v35 = vrot.slane %v34, 4
    %v36 = vmin.f32 %v34, %v35
    %v37 = vrot.slane %v36, 2
    %v38 = vmin.f32 %v36, %v37
    %v39 = vrot.slane %v38, 1
    %v40 = vmin.f32 %v38, %v39
    %s41 = vtos %v40
    %42 = vmax.xlane.f32.xlu0 %v30
    %v43 = vpop.xlane.xlu0 %42
    %v44 = vrot.slane %v43, 4
    %v45 = vmax.f32 %v43, %v44
    %v46 = vrot.slane %v45, 2
    %v47 = vmax.f32 %v45, %v46
    %v48 = vrot.slane %v47, 1
    %v49 = vmax.f32 %v47, %v48
    %s50 = vtos %v49
    %51 = vmin.xlane.f32.xlu0 %v32
    %v52 = vpop.xlane.xlu0 %51
    %v53 = vrot.slane %v52, 4
    %v54 = vmin.f32 %v52, %v53
    %v55 = vrot.slane %v54, 2
    %v56 = vmin.f32 %v54, %v55
    %v57 = vrot.slane %v56, 1
    %v58 = vmin.f32 %v56, %v57
    %s59 = vtos %v58
    %60 = vmax.xlane.f32.xlu0 %v32
    %v61 = vpop.xlane.xlu0 %60
    %v62 = vrot.slane %v61, 4
    %v63 = vmax.f32 %v61, %v62
    %v64 = vrot.slane %v63, 2
    %v65 = vmax.f32 %v63, %v64
    %v66 = vrot.slane %v65, 1
    %v67 = vmax.f32 %v65, %v66
    %s68 = vtos %v67
    %s69 = ssub.f32 %s50, %s41
    %s70 = ssub.f32 %s68, %s59
    %p71 = scmp.ne.f32.partialorder %s69, 0.0
    %s72 = scalar_select %p71, %s69, 1.0
    %v73 = vstv %s72
    %v74 = vrcp.pop %v73
    %v75 = vmul.f32 %v73, %v74
    %v76 = vsub.f32 1.0, %v75
    %v77 = vmul.f32 %v74, %v76
    %v78 = vadd.f32 %v74, %v77
    %vm79 = vweird.f32 %v73
    %vm80 = vweird.f32 %v74
    %vm81 = vmor %vm79, %vm80
    %v82 = vsel %vm81, %v74, %v78
    %v83 = vand.u32 2147483647, %v73
    %vm84 = vcmp.eq.f32.partialorder %v83, 8.507059e+37
    %v85 = vand.u32 %v73, 2147483648
    %v86 = vor.u32 1.1754944e-38, %v85
    %v87 = vsel %vm84, %v86, %v82
    %s88 = vtos %v87
    %s89 = scalar_select %p71, %s88, 0.0
    %p90 = scmp.ne.f32.partialorder %s70, 0.0
    %s91 = scalar_select %p90, %s70, 1.0
    %v92 = vstv %s91
    %v93 = vrcp.pop %v92
    %v94 = vmul.f32 %v92, %v93
    %v95 = vsub.f32 1.0, %v94
    %v96 = vmul.f32 %v93, %v95
    %v97 = vadd.f32 %v93, %v96
    %vm98 = vweird.f32 %v92
    %vm99 = vweird.f32 %v93
    %vm100 = vmor %vm98, %vm99
    %v101 = vsel %vm100, %v93, %v97
    %v102 = vand.u32 2147483647, %v92
    %vm103 = vcmp.eq.f32.partialorder %v102, 8.507059e+37
    %v104 = vand.u32 %v92, 2147483648
    %v105 = vor.u32 1.1754944e-38, %v104
    %v106 = vsel %vm103, %v105, %v101
    %s107 = vtos %v106
    %s108 = scalar_select %p90, %s107, 0.0
    %s109 = sadd.f32 %s29, 0.3
    %s110 = smul.f32 %s109, %s89
    %s111 = ssub.f32 1.55, %s29
    %s112 = smul.f32 %s111, %s108
    %s113 = smul.f32 %s110, %s41
    %s114 = smul.f32 %s112, %s59
    %s115 = sadd.f32 %s113, %s114
    %s116 = ssub.f32 0.0, %s115
    %v117 = vstv %s110
    %v118 = vmul.f32 %v117, %v30
    %v119 = vstv %s112
    %v120 = vmul.f32 %v119, %v32
    %v121 = vadd.f32 %v118, %v120
    %v122 = vstv %s116
    %v123 = vadd.f32 %v121, %v122
    %124 = vst [vmem:[#allocation6] sm:$0xff] %v123
    // Predicated region
    $region14: #{tpu_custom_call.1} parent=1 // pred_check
      _
    $region15: #{tpu_custom_call.1} parent=1 // pred_check_branch
      %126 = sbr.rel (0) target = $region17
    $region16: #{tpu_custom_call.1} parent=1 // pred_region
      %128 = vsyncadd [#allocation5], 0
      %s130 = sshll.u32 [#allocation6], 4
      %s131 = int_to_ptr.vmem [resolvable:$true] %s130
      %s132 = sshll.u32 %s2, 4
      %s133 = int_to_ptr.hbm [resolvable:$true] %s132
      %135 = dma.vmem_to_hbm [thread:$0]  %s131, 128, %s133, [#allocation5]
    $region17: #{tpu_custom_call.1} parent=1 // pred_fallthru
      _
    // Predicated region
    $region18: #{tpu_custom_call.1} parent=1 // pred_check
      _
    $region19: #{tpu_custom_call.1} parent=1 // pred_check_branch
      %137 = sbr.rel (0) target = $region21
    $region20: #{tpu_custom_call.1} parent=1 // pred_region
      %139 = dma.done [#allocation5], 128
    $region21: #{tpu_custom_call.1} parent=1 // pred_fallthru
      _
    %140 = vsyncpa [#allocation4], 1
    %141 = vsyncpa [#allocation5], 1

</llo_original>
